<compile_context>
chip_gen: v7x
topology: tpu7x:2x2x1
jax: 0.10.0
libtpu: 0.0.40
codegen_flags: <defaults>
</compile_context>

<pallas_src>
import jax
import jax.numpy as jnp
from jax.experimental import pallas as pl
from jax.experimental.pallas import tpu as pltpu

_LANE = 128      # vreg lane width (last dim)
_SUBLANE = 8     # vreg sublane width for 32-bit dtypes


def _round_up(n, m):
    return ((n + m - 1) // m) * m


def _vmem_budget():
    """Generation-gated VMEM limit + tiling budget (bytes)."""
    try:
        cap = int(pltpu.get_tpu_info().vmem_capacity_bytes)
    except Exception:
        cap = 64 * 1024 * 1024                    # conservative: v7x per-TC VMEM
    vmem_limit = min(96 * 1024 * 1024, (cap * 3) // 4)   # 96 MiB on 128 MiB parts, 48 MiB on v7x
    budget = vmem_limit - 4 * 1024 * 1024          # headroom for compiler scratch
    return vmem_limit, budget


# ----------------------------------------------------------------------------- kernels

def seq_expand_kernel(x_ref, y_ref, w1_ref, b1_ref, w2_ref, b2_ref, o_ref):
    """Fully VMEM-resident path: add -> linear -> relu -> linear."""
    s = x_ref[...] + y_ref[...]                                        # AddTensors
    h = jnp.dot(s, w1_ref[...], preferred_element_type=jnp.float32)    # Linear 1
    h = jnp.maximum(h + b1_ref[...], 0.0)                              # + bias, ReLU
    out = jnp.dot(h, w2_ref[...], preferred_element_type=jnp.float32)  # Linear 2
    o_ref[...] = (out + b2_ref[...]).astype(o_ref.dtype)


def seq_expand_htiled_kernel(x_ref, y_ref, w1_ref, b1_ref, w2_ref, b2_ref,
                             o_ref, acc_ref):
    """Hidden-tiled fallback: grid axis 1 walks H tiles; the second matmul is a
    K-split accumulation into an f32 scratch accumulator."""
    k = pl.program_id(1)

    @pl.when(k == 0)
    def _():
        acc_ref[...] = jnp.zeros_like(acc_ref)

    s = x_ref[...] + y_ref[...]                                        # AddTensors
    h = jnp.dot(s, w1_ref[...], preferred_element_type=jnp.float32)    # Linear 1 (H tile)
    h = jnp.maximum(h + b1_ref[...], 0.0)                              # + bias, ReLU
    acc_ref[...] += jnp.dot(h.astype(w2_ref.dtype), w2_ref[...],       # Linear 2 partial
                            preferred_element_type=jnp.float32)

    @pl.when(k == pl.num_programs(1) - 1)
    def _():
        o_ref[...] = (acc_ref[...] + b2_ref[...]).astype(o_ref.dtype)


# ----------------------------------------------------------------------------- wrapper

def prepare_params(w1, b1, w2, b2, *, compute_dtype=None, hidden_tile=None):
    """One-time (init-path) weight preparation — NOT run per call.

    Casts weights, reshapes biases to (1, N), decides between the fully
    VMEM-resident path (hidden_tile=None) and the hidden-tiled fallback, and
    zero-pads H once (numerically inert) if the fallback is used.
    """
    if compute_dtype is None:
        compute_dtype = w1.dtype
    D_in, H = w1.shape
    D_out = w2.shape[1]
    w_itemsize = jnp.dtype(compute_dtype).itemsize

    vmem_limit, budget = _vmem_budget()

    resident_bytes = (D_in * H + H + H * D_out + D_out) * w_itemsize
    if hidden_tile is None and resident_bytes > budget // 2:
        # Per-step weight-tile bytes (double-buffered) must leave room for activations.
        th = (budget // 2) // max(1, 2 * (D_in + D_out + 1) * w_itemsize)
        hidden_tile = max(_LANE, min(512, (th // _LANE) * _LANE))

    w1 = w1.astype(compute_dtype)
    w2 = w2.astype(compute_dtype)
    b1 = b1.reshape(1, -1).astype(compute_dtype)
    b2 = b2.reshape(1, -1).astype(compute_dtype)

    if hidden_tile is not None:
        h_p = _round_up(H, hidden_tile)
        if h_p != H:   # zero padding of hidden dim is mathematically inert here
            w1 = jnp.pad(w1, ((0, 0), (0, h_p - H)))
            b1 = jnp.pad(b1, ((0, 0), (0, h_p - H)))
            w2 = jnp.pad(w2, ((0, h_p - H), (0, 0)))

    return dict(w1=w1, b1=b1, w2=w2, b2=b2, hidden_tile=hidden_tile,
                vmem_limit=vmem_limit, budget=budget)


def sequential_expand(x, y, params, *, block_b=None):
    w1, b1, w2, b2 = params["w1"], params["b1"], params["w2"], params["b2"]
    th = params["hidden_tile"]
    vmem_limit, budget = params["vmem_limit"], params["budget"]

    B, D_in = x.shape
    H = w1.shape[1]               # possibly padded hidden width (fallback path)
    D_out = w2.shape[1]
    dtype = x.dtype
    itemsize = jnp.dtype(dtype).itemsize
    w_itemsize = jnp.dtype(w1.dtype).itemsize

    sub = max(_SUBLANE, 32 // itemsize)      # dtype-aware sublane granule (8/16/32)

    # ---- batch tile sizing from the VMEM budget -----------------------------
    stream_row = (2 * D_in + 2 * D_in + 2 * D_out) * itemsize   # x, y, out (double-buffered)
    if th is None:
        resident = (D_in * H + H + H * D_out + D_out) * w_itemsize        # Buffered(1) -> 1x
        temp_row = (D_in + H + D_out) * 4                                  # f32 temporaries
    else:
        resident = (2 * (D_in * th + th + th * D_out) + D_out) * w_itemsize  # tiles double-buffered
        temp_row = (D_in + th + 2 * D_out) * 4                              # temps + f32 acc scratch
    if block_b is None:
        avail = budget - resident
        block_b = avail // max(1, stream_row + temp_row)
        block_b = max(sub, min(1024, (block_b // sub) * sub))

    b_ceil = _round_up(B, sub)
    tb = min(block_b, b_ceil)
    # v7x megacore: ensure >= 2 steps on the "parallel" batch axis when possible.
    if tb >= b_ceil and b_ceil > sub:
        tb = max(sub, _round_up(-(-b_ceil // 2), sub))
    b_p = _round_up(B, tb)

    # Batch padding only when needed; feature dims stay at their true width
    # (no lane-inflation of streamed HBM traffic, no output column slice).
    if b_p != B:
        x = jnp.pad(x, ((0, b_p - B), (0, 0)))
        y = jnp.pad(y, ((0, b_p - B), (0, 0)))

    flops = 2 * b_p * (D_in * H + H * D_out)
    bytes_accessed = ((2 * b_p * D_in + b_p * D_out) * itemsize
                      + (w1.size + b1.size + w2.size + b2.size) * w_itemsize)
    cost = pl.CostEstimate(flops=flops, transcendentals=0,
                           bytes_accessed=bytes_accessed)

    if th is None:
        out_p = pl.pallas_call(
            seq_expand_kernel,
            out_shape=jax.ShapeDtypeStruct((b_p, D_out), dtype),
            grid=(b_p // tb,),
            in_specs=[
                pl.BlockSpec((tb, D_in), lambda i: (i, 0)),     # x: batch-tiled stream
                pl.BlockSpec((tb, D_in), lambda i: (i, 0)),     # y: batch-tiled stream
                pl.BlockSpec((D_in, H), lambda i: (0, 0),       # w1: VMEM-resident, 1 buffer
                             pipeline_mode=pl.Buffered(1)),
                pl.BlockSpec((1, H), lambda i: (0, 0),
                             pipeline_mode=pl.Buffered(1)),
                pl.BlockSpec((H, D_out), lambda i: (0, 0),
                             pipeline_mode=pl.Buffered(1)),
                pl.BlockSpec((1, D_out), lambda i: (0, 0),
                             pipeline_mode=pl.Buffered(1)),
            ],
            out_specs=pl.BlockSpec((tb, D_out), lambda i: (i, 0)),
            compiler_params=pltpu.CompilerParams(
                dimension_semantics=("parallel",),
                vmem_limit_bytes=vmem_limit),
            cost_estimate=cost,
        )(x, y, w1, b1, w2, b2)
    else:
        out_p = pl.pallas_call(
            seq_expand_htiled_kernel,
            out_shape=jax.ShapeDtypeStruct((b_p, D_out), dtype),
            grid=(b_p // tb, H // th),
            in_specs=[
                pl.BlockSpec((tb, D_in), lambda i, k: (i, 0)),   # constant over k -> fetched once per i
                pl.BlockSpec((tb, D_in), lambda i, k: (i, 0)),
                pl.BlockSpec((D_in, th), lambda i, k: (0, k)),   # W1 column tile
                pl.BlockSpec((1, th), lambda i, k: (0, k)),      # b1 tile
                pl.BlockSpec((th, D_out), lambda i, k: (k, 0)),  # W2 row tile
                pl.BlockSpec((1, D_out), lambda i, k: (0, 0),
                             pipeline_mode=pl.Buffered(1)),
            ],
            out_specs=pl.BlockSpec((tb, D_out), lambda i, k: (i, 0)),
            scratch_shapes=[pltpu.VMEM((tb, D_out), jnp.float32)],
            compiler_params=pltpu.CompilerParams(
                dimension_semantics=("parallel", "arbitrary"),
                vmem_limit_bytes=vmem_limit),
            cost_estimate=cost,
        )(x, y, w1, b1, w2, b2)

    return out_p if b_p == B else out_p[:B]


def reference(x, y, w1, b1, w2, b2):
    s = x + y
    h = jnp.maximum(s @ w1 + b1.reshape(1, -1), 0.0)
    return h @ w2 + b2.reshape(1, -1)


if __name__ == "__main__":
    key = jax.random.PRNGKey(0)

    # ---- main check: fully VMEM-resident fused path -------------------------
    B, D_in, H, D_out = 8, 32, 64, 32
    k_x, k_y, k_w1, k_b1, k_w2, k_b2 = jax.random.split(key, 6)
    x = jax.random.normal(k_x, (B, D_in), dtype=jnp.float32)
    y = jax.random.normal(k_y, (B, D_in), dtype=jnp.float32)

    bound1 = 1.0 / (D_in ** 0.5)
    bound2 = 1.0 / (H ** 0.5)
    w1 = jax.random.uniform(k_w1, (D_in, H), jnp.float32, -bound1, bound1)
    b1 = jax.random.uniform(k_b1, (H,), jnp.float32, -bound1, bound1)
    w2 = jax.random.uniform(k_w2, (H, D_out), jnp.float32, -bound2, bound2)
    b2 = jax.random.uniform(k_b2, (D_out,), jnp.float32, -bound2, bound2)

    params = prepare_params(w1, b1, w2, b2)          # one-time init-path weight prep
    out = jax.block_until_ready(sequential_expand(x, y, params))
    ref = reference(x, y, w1, b1, w2, b2)
    assert out.shape == (B, D_out)
    assert jnp.allclose(out, ref, atol=1e-5, rtol=1e-5), "resident path mismatch"

    # ---- secondary check: hidden-tiled fallback (large-H / v7x VMEM path) ----
    B2, H2 = 16, 256
    k_x2, k_y2, k_w1b, k_b1b, k_w2b, k_b2b = jax.random.split(jax.random.PRNGKey(1), 6)
    x2 = jax.random.normal(k_x2, (B2, D_in), dtype=jnp.float32)
    y2 = jax.random.normal(k_y2, (B2, D_in), dtype=jnp.float32)
    w1b = jax.random.uniform(k_w1b, (D_in, H2), jnp.float32, -bound1, bound1)
    b1b = jax.random.uniform(k_b1b, (H2,), jnp.float32, -bound1, bound1)
    bound2b = 1.0 / (H2 ** 0.5)
    w2b = jax.random.uniform(k_w2b, (H2, D_out), jnp.float32, -bound2b, bound2b)
    b2b = jax.random.uniform(k_b2b, (D_out,), jnp.float32, -bound2b, bound2b)

    params2 = prepare_params(w1b, b1b, w2b, b2b, hidden_tile=128)  # force fallback path
    out2 = jax.block_until_ready(sequential_expand(x2, y2, params2))
    ref2 = reference(x2, y2, w1b, b1b, w2b, b2b)
    # Split-K f32 accumulation order differs slightly from XLA's single-pass dot.
    assert out2.shape == (B2, D_out)
    assert jnp.allclose(out2, ref2, atol=1e-4, rtol=1e-5), "hidden-tiled path mismatch"

    print("KERNEL_OK")
</pallas_src>

<mosaic_0001>
module attributes {stable_mosaic.version = 11 : i64} {
  func.func @seq_expand_kernel(%arg0: i32, %arg1: memref<8x32xf32, #tpu.memory_space<vmem>>, %arg2: memref<8x32xf32, #tpu.memory_space<vmem>>, %arg3: memref<32x64xf32, #tpu.memory_space<vmem>>, %arg4: memref<1x64xf32, #tpu.memory_space<vmem>>, %arg5: memref<64x32xf32, #tpu.memory_space<vmem>>, %arg6: memref<1x32xf32, #tpu.memory_space<vmem>>, %arg7: memref<8x32xf32, #tpu.memory_space<vmem>>) attributes {dimension_semantics = [#tpu.dimension_semantics<parallel>], iteration_bounds = array<i64: 1>, scalar_prefetch = 0 : i64, scratch_operands = 0 : i64, tpu.core_type = #tpu.core_type<tc>, window_params = [{transform_indices = @transform_0, window_bounds = array<i64: 8, 32>}, {transform_indices = @transform_1, window_bounds = array<i64: 8, 32>}, {pipeline_mode = #tpu.pipeline_mode<synchronous>, transform_indices = @transform_2, window_bounds = array<i64: 32, 64>}, {pipeline_mode = #tpu.pipeline_mode<synchronous>, transform_indices = @transform_3, window_bounds = array<i64: 1, 64>}, {pipeline_mode = #tpu.pipeline_mode<synchronous>, transform_indices = @transform_4, window_bounds = array<i64: 64, 32>}, {pipeline_mode = #tpu.pipeline_mode<synchronous>, transform_indices = @transform_5, window_bounds = array<i64: 1, 32>}, {transform_indices = @transform_6, window_bounds = array<i64: 8, 32>}]} {
    %c0 = arith.constant 0 : index
    %c0_0 = arith.constant 0 : index
    %0 = vector.load %arg1[%c0, %c0_0] : memref<8x32xf32, #tpu.memory_space<vmem>>, vector<8x32xf32>
    %c0_1 = arith.constant 0 : index
    %c0_2 = arith.constant 0 : index
    %1 = vector.load %arg2[%c0_1, %c0_2] : memref<8x32xf32, #tpu.memory_space<vmem>>, vector<8x32xf32>
    %2 = arith.addf %0, %1 : vector<8x32xf32>
    %c0_3 = arith.constant 0 : index
    %c0_4 = arith.constant 0 : index
    %3 = vector.load %arg3[%c0_3, %c0_4] : memref<32x64xf32, #tpu.memory_space<vmem>>, vector<32x64xf32>
    %cst = arith.constant dense<0.000000e+00> : vector<8x64xf32>
    %4 = tpu.matmul %2, %3, %cst {dimension_numbers = #tpu.dot_dimension_numbers<[1], [0], [0], [1], [0, 0, 1, 1], [], []>} : vector<8x32xf32>, vector<32x64xf32>, vector<8x64xf32> -> vector<8x64xf32>
    %c0_5 = arith.constant 0 : index
    %c0_6 = arith.constant 0 : index
    %5 = vector.load %arg4[%c0_5, %c0_6] : memref<1x64xf32, #tpu.memory_space<vmem>>, vector<1x64xf32>
    %6 = vector.broadcast %5 : vector<1x64xf32> to vector<8x64xf32>
    %7 = arith.addf %4, %6 : vector<8x64xf32>
    %cst_7 = arith.constant 0.000000e+00 : f32
    %8 = vector.broadcast %cst_7 : f32 to vector<8x64xf32>
    %9 = arith.maximumf %7, %8 : vector<8x64xf32>
    %c0_8 = arith.constant 0 : index
    %c0_9 = arith.constant 0 : index
    %10 = vector.load %arg5[%c0_8, %c0_9] : memref<64x32xf32, #tpu.memory_space<vmem>>, vector<64x32xf32>
    %cst_10 = arith.constant dense<0.000000e+00> : vector<8x32xf32>
    %11 = tpu.matmul %9, %10, %cst_10 {dimension_numbers = #tpu.dot_dimension_numbers<[1], [0], [0], [1], [0, 0, 1, 1], [], []>} : vector<8x64xf32>, vector<64x32xf32>, vector<8x32xf32> -> vector<8x32xf32>
    %c0_11 = arith.constant 0 : index
    %c0_12 = arith.constant 0 : index
    %12 = vector.load %arg6[%c0_11, %c0_12] : memref<1x32xf32, #tpu.memory_space<vmem>>, vector<1x32xf32>
    %13 = vector.broadcast %12 : vector<1x32xf32> to vector<8x32xf32>
    %14 = arith.addf %11, %13 : vector<8x32xf32>
    %c0_13 = arith.constant 0 : index
    %c0_14 = arith.constant 0 : index
    %15 = vector.load %arg7[%c0_13, %c0_14] : memref<8x32xf32, #tpu.memory_space<vmem>>, vector<8x32xf32>
    tpu.vector_store %arg7[%c0_13, %c0_14], %14 {strides = array<i32>} : memref<8x32xf32, #tpu.memory_space<vmem>>, vector<8x32xf32>,
    return
  }
  func.func @transform_0(%arg0: i32) -> (i32, i32) {
    %c0_i32 = arith.constant 0 : i32
    %c0_i32_0 = arith.constant 0 : i32
    return %arg0, %c0_i32 : i32, i32
  }
  func.func @transform_1(%arg0: i32) -> (i32, i32) {
    %c0_i32 = arith.constant 0 : i32
    %c0_i32_0 = arith.constant 0 : i32
    return %arg0, %c0_i32 : i32, i32
  }
  func.func @transform_2(%arg0: i32) -> (i32, i32) {
    %c0_i32 = arith.constant 0 : i32
    %c0_i32_0 = arith.constant 0 : i32
    %c0_i32_1 = arith.constant 0 : i32
    return %c0_i32, %c0_i32_0 : i32, i32
  }
  func.func @transform_3(%arg0: i32) -> (i32, i32) {
    %c0_i32 = arith.constant 0 : i32
    %c0_i32_0 = arith.constant 0 : i32
    %c0_i32_1 = arith.constant 0 : i32
    return %c0_i32, %c0_i32_0 : i32, i32
  }
  func.func @transform_4(%arg0: i32) -> (i32, i32) {
    %c0_i32 = arith.constant 0 : i32
    %c0_i32_0 = arith.constant 0 : i32
    %c0_i32_1 = arith.constant 0 : i32
    return %c0_i32, %c0_i32_0 : i32, i32
  }
  func.func @transform_5(%arg0: i32) -> (i32, i32) {
    %c0_i32 = arith.constant 0 : i32
    %c0_i32_0 = arith.constant 0 : i32
    %c0_i32_1 = arith.constant 0 : i32
    return %c0_i32, %c0_i32_0 : i32, i32
  }
  func.func @transform_6(%arg0: i32) -> (i32, i32) {
    %c0_i32 = arith.constant 0 : i32
    %c0_i32_0 = arith.constant 0 : i32
    return %arg0, %c0_i32 : i32, i32
  }
}

</mosaic_0001>

<llo_original>
// kernel: tpu_custom_call.1
$region0: #{tpu_custom_call.1}
  #allocation0 [shape = 'u32[]', space=smem, size = 0x4, offset = 0x4, fixed_abs, tag = 'smem constant byte address 0x4 - core index']
  #allocation1 [shape = 'u32[144,128]{1,0:T(1,128)}', space=vmem, size = 0x12000, scoped, tag = 'internal scratch']
  %s0 = inlined_call_operand.vmem [shape: f32[8,32], index: 0, kind: input, shape index: {}]
  %s1 = inlined_call_operand.vmem [shape: f32[8,32], index: 1, kind: input, shape index: {}]
  %s2 = inlined_call_operand.vmem [shape: f32[32,64], index: 2, kind: input, shape index: {}]
  %s3 = inlined_call_operand.vmem [shape: f32[1,64], index: 3, kind: input, shape index: {}]
  %s4 = inlined_call_operand.vmem [shape: f32[64,32], index: 4, kind: input, shape index: {}]
  %s5 = inlined_call_operand.vmem [shape: f32[1,32], index: 5, kind: input, shape index: {}]
  %s6 = inlined_call_operand.hbm [shape: f32[8,32], index: 6, kind: output, shape index: {}]
  %s7 = sld [smem:[#allocation0]]
  $region34: #{tpu_custom_call.1} parent=0
    _
  %s9 = ssub.s32 1, %s7
  %s10 = scalar_select 0, %s9, %s7
  $region1: #{tpu_custom_call.1} parent=0
    #allocation2 [shape = 'u8[4096]{0}', space=vmem, size = 0x1000, scoped, tag = 'output window, operand 0, single buffered']
    #allocation3 [shape = 's32[1]{0}', space=sflag, size = 0x4, scoped, tag = 'scoped memory for tpu_custom_call.1']
    %11 = vsyncpa [#allocation3], 0
    // Predicated region
    $region2: #{tpu_custom_call.1} parent=1 // pred_check
      _
    $region3: #{tpu_custom_call.1} parent=1 // pred_check_branch
      %13 = sbr.rel (0) target = $region5
    $region4: #{tpu_custom_call.1} parent=1 // pred_region
      _
    $region5: #{tpu_custom_call.1} parent=1 // pred_fallthru
      _
    // Predicated region
    $region6: #{tpu_custom_call.1} parent=1 // pred_check
      _
    $region7: #{tpu_custom_call.1} parent=1 // pred_check_branch
      %15 = sbr.rel (0) target = $region9
    $region8: #{tpu_custom_call.1} parent=1 // pred_region
      _
    $region9: #{tpu_custom_call.1} parent=1 // pred_fallthru
      _
    // Predicated region
    $region10: #{tpu_custom_call.1} parent=1 // pred_check
      _
    $region11: #{tpu_custom_call.1} parent=1 // pred_check_branch
      %17 = sbr.rel (0) target = $region13
    $region12: #{tpu_custom_call.1} parent=1 // pred_region
      _
    $region13: #{tpu_custom_call.1} parent=1 // pred_fallthru
      _
    // Predicated region
    $region14: #{tpu_custom_call.1} parent=1 // pred_check
      _
    $region15: #{tpu_custom_call.1} parent=1 // pred_check_branch
      %19 = sbr.rel (0) target = $region17
    $region16: #{tpu_custom_call.1} parent=1 // pred_region
      _
    $region17: #{tpu_custom_call.1} parent=1 // pred_fallthru
      _
    // Predicated region
    $region18: #{tpu_custom_call.1} parent=1 // pred_check
      _
    $region19: #{tpu_custom_call.1} parent=1 // pred_check_branch
      %21 = sbr.rel (0) target = $region21
    $region20: #{tpu_custom_call.1} parent=1 // pred_region
      _
    $region21: #{tpu_custom_call.1} parent=1 // pred_fallthru
      _
    // Predicated region
    $region22: #{tpu_custom_call.1} parent=1 // pred_check
      _
    $region23: #{tpu_custom_call.1} parent=1 // pred_check_branch
      %23 = sbr.rel (0) target = $region25
    $region24: #{tpu_custom_call.1} parent=1 // pred_region
      _
    $region25: #{tpu_custom_call.1} parent=1 // pred_fallthru
      _
    %v24 = vld [vmem:[%s0] sm:$0xff]
    %v25 = vld [vmem:[%s1] sm:$0xff]
    %v26 = vadd.f32 %v24, %v25
    %v27 = vld [vmem:[%s2] sm:$0xff]
    %v28 = vld [vmem:[%s2 + $0x8] sm:$0xff]
    %v29 = vld [vmem:[%s2 + $0x10] sm:$0xff]
    %v30 = vld [vmem:[%s2 + $0x18] sm:$0xff]
    %v31 = vld [vmem:[%s3] sm:$0x1]
    %v33 = vlaneseq
    %v34 = vshrl.u32 %v33, 7
    %v35 = vsub.s32 0, %v34
    %v36 = vrot.slane %v31, %v35
    %vm38 = vcmask 261120
    %v40 = vsel %vm38, %v26, 0
    %42 = vmatprep.subr.mxu0 0.0
    %43 = vmatpush1.msra.mxu0 %v27
    %44 = vmatprep.subr.mxu0 0.0
    %45 = vmatpush1.msra.mxu0 %v28
    %46 = vmatprep.subr.mxu0 0.0
    %47 = vmatpush1.msra.mxu0 %v29
    %48 = vmatprep.subr.mxu0 0.0
    %49 = vmatpush1.msra.mxu0 %v30
    %50 = vmatprep.subr.mxu0 0.0
    %51 = vmatpush1.msra.mxu0 0.0
    %52 = vmatprep.subr.mxu0 0.0
    %53 = vmatpush1.msra.mxu0 0.0
    %54 = vmatprep.subr.mxu0 0.0
    %55 = vmatpush1.msra.mxu0 0.0
    %56 = vmatprep.subr.mxu0 0.0
    %57 = vmatpush1.msra.mxu0 0.0
    %58 = vmatprep.subr.mxu0 0.0
    %59 = vmatpush1.msra.mxu0 0.0
    %60 = vmatprep.subr.mxu0 0.0
    %61 = vmatpush1.msra.mxu0 0.0
    %62 = vmatprep.subr.mxu0 0.0
    %63 = vmatpush1.msra.mxu0 0.0
    %64 = vmatprep.subr.mxu0 0.0
    %65 = vmatpush1.msra.mxu0 0.0
    %66 = vmatprep.subr.mxu0 0.0
    %67 = vmatpush1.msra.mxu0 0.0
    %68 = vmatprep.subr.mxu0 0.0
    %69 = vmatpush1.msra.mxu0 0.0
    %70 = vmatprep.subr.mxu0 0.0
    %71 = vmatpush1.msra.mxu0 0.0
    %72 = vmatprep.subr.mxu0 0.0
    %73 = vmatpush1.msra.mxu0 0.0
    %74 = vmatprep.subr.mxu0 0.0
    %75 = vmatpush1.msra.mxu0 0.0
    %76 = vmatprep.subr.mxu0 0.0
    %77 = vmatpush1.msra.mxu0 0.0
    %78 = vmatprep.subr.mxu0 0.0
    %79 = vmatpush1.msra.mxu0 0.0
    %80 = vmatprep.subr.mxu0 0.0
    %81 = vmatpush1.msra.mxu0 0.0
    %82 = vmatprep.subr.mxu0 0.0
    %83 = vmatpush1.msra.mxu0 0.0
    %84 = vmatprep.subr.mxu0 0.0
    %85 = vmatpush1.msra.mxu0 0.0
    %86 = vmatprep.subr.mxu0 0.0
    %87 = vmatpush1.msra.mxu0 0.0
    %88 = vmatprep.subr.mxu0 0.0
    %89 = vmatpush1.msra.mxu0 0.0
    %90 = vmatprep.subr.mxu0 0.0
    %91 = vmatpush1.msra.mxu0 0.0
    %92 = vmatprep.subr.mxu0 0.0
    %93 = vmatpush1.msra.mxu0 0.0
    %94 = vmatprep.subr.mxu0 0.0
    %95 = vmatpush1.msra.mxu0 0.0
    %96 = vmatprep.subr.mxu0 0.0
    %97 = vmatpush1.msra.mxu0 0.0
    %98 = vmatprep.subr.mxu0 0.0
    %99 = vmatpush1.msra.mxu0 0.0
    %100 = vmatprep.subr.mxu0 0.0
    %101 = vmatpush1.msra.mxu0 0.0
    %102 = vmatprep.subr.mxu0 0.0
    %103 = vmatpush1.msra.mxu0 0.0
    %104 = vmatprep.subr.mxu0 0.0
    %105 = vmatpush1.msra.mxu0 0.0
    %106 = vmatprep.mubr.f32.mxu0 0.0
    %107 = vmatmul.mubr.f32.gmra.mrb[0].mxu0 %v40
    %v108 = vpop.f32.mrb[0].mxu0
    %v109 = vadd.f32 %v36, %v108
    %v110 = vpop.f32.mrb[0].mxu0
    %111 = vdwg.mxu0
    %v112 = vmax.f32 %v109, 0.0
    %v113 = vld [vmem:[%s4] sm:$0xff]
    %v114 = vld [vmem:[%s4 + $0x8] sm:$0xff]
    %v115 = vld [vmem:[%s4 + $0x10] sm:$0xff]
    %v116 = vld [vmem:[%s4 + $0x18] sm:$0xff]
    %v117 = vld [vmem:[%s4 + $0x20] sm:$0xff]
    %v118 = vld [vmem:[%s4 + $0x28] sm:$0xff]
    %v119 = vld [vmem:[%s4 + $0x30] sm:$0xff]
    %v120 = vld [vmem:[%s4 + $0x38] sm:$0xff]
    %v121 = vld [vmem:[%s5] sm:$0x1]
    %v123 = vlaneseq
    %v124 = vshrl.u32 %v123, 7
    %v125 = vsub.s32 0, %v124
    %v126 = vrot.slane %v121, %v125
    %vm128 = vcmask 523264
    %v130 = vsel %vm128, %v112, 0
    %132 = vmatprep.subr.mxu0 0.0
    %133 = vmatpush1.msra.mxu0 %v113
    %134 = vmatprep.subr.mxu0 0.0
    %135 = vmatpush1.msra.mxu0 %v114
    %136 = vmatprep.subr.mxu0 0.0
    %137 = vmatpush1.msra.mxu0 %v115
    %138 = vmatprep.subr.mxu0 0.0
    %139 = vmatpush1.msra.mxu0 %v116
    %140 = vmatprep.subr.mxu0 0.0
    %141 = vmatpush1.msra.mxu0 %v117
    %142 = vmatprep.subr.mxu0 0.0
    %143 = vmatpush1.msra.mxu0 %v118
    %144 = vmatprep.subr.mxu0 0.0
    %145 = vmatpush1.msra.mxu0 %v119
    %146 = vmatprep.subr.mxu0 0.0
    %147 = vmatpush1.msra.mxu0 %v120
    %148 = vmatprep.subr.mxu0 0.0
    %149 = vmatpush1.msra.mxu0 0.0
    %150 = vmatprep.subr.mxu0 0.0
    %151 = vmatpush1.msra.mxu0 0.0
    %152 = vmatprep.subr.mxu0 0.0
    %153 = vmatpush1.msra.mxu0 0.0
    %154 = vmatprep.subr.mxu0 0.0
    %155 = vmatpush1.msra.mxu0 0.0
    %156 = vmatprep.subr.mxu0 0.0
    %157 = vmatpush1.msra.mxu0 0.0
    %158 = vmatprep.subr.mxu0 0.0
    %159 = vmatpush1.msra.mxu0 0.0
    %160 = vmatprep.subr.mxu0 0.0
    %161 = vmatpush1.msra.mxu0 0.0
    %162 = vmatprep.subr.mxu0 0.0
    %163 = vmatpush1.msra.mxu0 0.0
    %164 = vmatprep.subr.mxu0 0.0
    %165 = vmatpush1.msra.mxu0 0.0
    %166 = vmatprep.subr.mxu0 0.0
    %167 = vmatpush1.msra.mxu0 0.0
    %168 = vmatprep.subr.mxu0 0.0
    %169 = vmatpush1.msra.mxu0 0.0
    %170 = vmatprep.subr.mxu0 0.0
    %171 = vmatpush1.msra.mxu0 0.0
    %172 = vmatprep.subr.mxu0 0.0
    %173 = vmatpush1.msra.mxu0 0.0
    %174 = vmatprep.subr.mxu0 0.0
    %175 = vmatpush1.msra.mxu0 0.0
    %176 = vmatprep.subr.mxu0 0.0
    %177 = vmatpush1.msra.mxu0 0.0
    %178 = vmatprep.subr.mxu0 0.0
    %179 = vmatpush1.msra.mxu0 0.0
    %180 = vmatprep.subr.mxu0 0.0
    %181 = vmatpush1.msra.mxu0 0.0
    %182 = vmatprep.subr.mxu0 0.0
    %183 = vmatpush1.msra.mxu0 0.0
    %184 = vmatprep.subr.mxu0 0.0
    %185 = vmatpush1.msra.mxu0 0.0
    %186 = vmatprep.subr.mxu0 0.0
    %187 = vmatpush1.msra.mxu0 0.0
    %188 = vmatprep.subr.mxu0 0.0
    %189 = vmatpush1.msra.mxu0 0.0
    %190 = vmatprep.subr.mxu0 0.0
    %191 = vmatpush1.msra.mxu0 0.0
    %192 = vmatprep.subr.mxu0 0.0
    %193 = vmatpush1.msra.mxu0 0.0
    %194 = vmatprep.subr.mxu0 0.0
    %195 = vmatpush1.msra.mxu0 0.0
    %196 = vmatprep.mubr.f32.mxu0 0.0
    %197 = vmatmul.mubr.f32.gmra.mrb[0].mxu0 %v130
    %v198 = vpop.f32.mrb[0].mxu0
    %v199 = vadd.f32 %v126, %v198
    %v200 = vpop.f32.mrb[0].mxu0
    %201 = vdwg.mxu0
    %202 = vst.msk [vmem:[#allocation2] sm:$0xff] %vm38, %v199
    // Predicated region
    $region26: #{tpu_custom_call.1} parent=1 // pred_check
      _
    $region27: #{tpu_custom_call.1} parent=1 // pred_check_branch
      %204 = sbr.rel (0) target = $region29
    $region28: #{tpu_custom_call.1} parent=1 // pred_region
      %s206 = ssub.s32 128, 128
      %207 = vsyncadd [#allocation3], %s206
      %s209 = sshll.u32 [#allocation2], 4
      %s210 = int_to_ptr.vmem [resolvable:$true] %s209
      %212 = dma.vmem_to_hbm [thread:$0]  %s210, 128, %s6, [#allocation3]
    $region29: #{tpu_custom_call.1} parent=1 // pred_fallthru
      _
    // Predicated region
    $region30: #{tpu_custom_call.1} parent=1 // pred_check
      _
    $region31: #{tpu_custom_call.1} parent=1 // pred_check_branch
      %214 = sbr.rel (0) target = $region33
    $region32: #{tpu_custom_call.1} parent=1 // pred_region
      %215 = dma.done [#allocation3], 128
    $region33: #{tpu_custom_call.1} parent=1 // pred_fallthru
      _
    %216 = vsyncpa [#allocation3], 1

</llo_original>
